<compile_context>
chip_gen: v7x
topology: tpu7x:2x2x1
jax: 0.10.0
libtpu: 0.0.40
codegen_flags: <defaults>
</compile_context>

<pallas_src>
import functools
import math

import jax
import jax.numpy as jnp
from jax.experimental import pallas as pl
from jax.experimental.pallas import tpu as pltpu


_NT = (((1,), (1,)), ((), ()))  # A @ B.T contraction: MXU consumes RHS transposed natively
_EPS = 1e-12                    # F.normalize default eps


def _vmem_capacity_bytes():
    """Per-core VMEM capacity; conservative 64 MiB (v7x per-TC) fallback."""
    try:
        cap = getattr(pltpu.get_tpu_info(), "vmem_capacity_bytes", None)
        if cap:
            return int(cap)
    except Exception:
        pass
    return 64 << 20


def _mxu_dim():
    """Native MXU output-tile edge: 128 up to v5, 256 on v6e/v7x."""
    try:
        kind = jax.devices()[0].device_kind.lower()
        if any(v in kind for v in ("v2", "v3", "v4", "v5")):
            return 128
    except Exception:
        pass
    return 256


def _l2_normalize(v):
    # 1/max(||v||, eps) == rsqrt(max(||v||^2, eps^2)): one EUP rsqrt + VPU mul.
    v = v.astype(jnp.float32)
    ssq = jnp.sum(v * v, axis=1, keepdims=True)
    return v * jax.lax.rsqrt(jnp.maximum(ssq, _EPS * _EPS))


def _align_pow(x, y, alpha):
    # ||x_i - y_i||^alpha for unit-norm rows.  Kept (rows, 1): sublane-natural,
    # lane-axis reduce stays a single XLU pass (no 1-D lane relayouts).
    dot_xy = jnp.sum(x * y, axis=1, keepdims=True)
    ssq = jnp.maximum(2.0 - 2.0 * dot_xy, 0.0)
    if float(alpha) == 2.0:
        return ssq                                    # alpha=2: skip the pow entirely
    # ||.||^alpha = (||.||^2)^(alpha/2); log(0) -> -inf -> exp -> 0 for alpha > 0.
    return jnp.exp((0.5 * float(alpha)) * jnp.log(ssq))


# ------------------------------- single-tile path -------------------------------

def _single_tile_kernel(za_ref, zb_ref, out_ref, *scratch,
                        t, lam, alpha, b, stacked, bf16_gram):
    x = _l2_normalize(za_ref[...])
    y = _l2_normalize(zb_ref[...])

    lalign = jnp.sum(_align_pow(x, y, alpha)) / b

    two_t = 2.0 * float(t)
    n_pairs = b * (b - 1) / 2.0
    gram_dtype = jnp.bfloat16 if bf16_gram else jnp.float32

    # Uniformity with folded constants: exp(-t*(2-2G)) = exp(-2t) * exp(2t*G).
    # The exp(-2t) factor and 1/(2*n_pairs) live in the scalar epilogue, so the
    # per-element work is a single EUP exp (no 2-2G / *-t / clamp VPU ops).
    # Diagonal removal uses G_ii == 1 for unit-norm rows (degenerate all-zero
    # embedding rows are off spec, same as the previous version).
    def unif_mean(g):
        e_sum = jnp.sum(jnp.exp(two_t * g))
        return (e_sum * math.exp(-two_t) - g.shape[0]) / (2.0 * n_pairs)

    if stacked:
        # One (2b,2b) Gram = one MXU push/drain while 2b fits a native MXU tile.
        # Fill the halves of a VMEM scratch instead of jnp.concatenate: no extra
        # copy/relayout traffic and a smaller resident working set.
        vcat_ref = scratch[0]
        vcat_ref[:b, :] = x
        vcat_ref[b:, :] = y
        v = vcat_ref[...].astype(gram_dtype)
        gram = jax.lax.dot_general(v, v, _NT, preferred_element_type=jnp.float32)
        mean_x = unif_mean(gram[:b, :b])
        mean_y = unif_mean(gram[b:, b:])
    else:
        xg = x.astype(gram_dtype)
        yg = y.astype(gram_dtype)
        gx = jax.lax.dot_general(xg, xg, _NT, preferred_element_type=jnp.float32)
        gy = jax.lax.dot_general(yg, yg, _NT, preferred_element_type=jnp.float32)
        mean_x = unif_mean(gx)
        mean_y = unif_mean(gy)

    lunif = (jnp.log(mean_x) + jnp.log(mean_y)) * 0.5
    loss = -(lalign + lam * lunif)
    out_ref[...] = jnp.broadcast_to(loss, (1, 1)).astype(out_ref.dtype)


# --------------------------------- tiled path -----------------------------------

def _pair_block_kernel(ii_ref, jj_ref, xr_ref, xc_ref, yr_ref, yc_ref, out_ref,
                       *, t, alpha, b, tb, bf16_gram):
    p = pl.program_id(0)
    i = ii_ref[p]                       # row-block index (SMEM scalar read)
    j = jj_ref[p]                       # col-block index, j >= i

    xr = _l2_normalize(xr_ref[...])
    xc = _l2_normalize(xc_ref[...])
    yr = _l2_normalize(yr_ref[...])
    yc = _l2_normalize(yc_ref[...])

    # bf16 MXU feed with f32 accumulation: unit-norm entries are in [-1, 1].
    gram_dtype = jnp.bfloat16 if bf16_gram else jnp.float32
    gx = jax.lax.dot_general(xr.astype(gram_dtype), xc.astype(gram_dtype), _NT,
                             preferred_element_type=jnp.float32)
    gy = jax.lax.dot_general(yr.astype(gram_dtype), yc.astype(gram_dtype), _NT,
                             preferred_element_type=jnp.float32)

    two_t = 2.0 * float(t)
    rows = jax.lax.broadcasted_iota(jnp.int32, (tb, tb), 0) + i * tb
    cols = jax.lax.broadcasted_iota(jnp.int32, (tb, tb), 1) + j * tb
    # Mask padded rows/cols and the true diagonal (matches torch.pdist exactly).
    # The select rides in spare VALU slots while the EUP crunches the exps.
    valid = (rows < b) & (cols < b) & (rows != cols)

    # Off-diagonal block pairs stand in for their unvisited mirror (j, i): weight 2.
    w = jnp.where(i == j, 1.0, 2.0)
    sum_x = jnp.sum(jnp.where(valid, jnp.exp(two_t * gx), 0.0)) * w
    sum_y = jnp.sum(jnp.where(valid, jnp.exp(two_t * gy), 0.0)) * w

    # Alignment contribution only on diagonal blocks (row block == col block).
    row_ids = jax.lax.broadcasted_iota(jnp.int32, (tb, 1), 0) + i * tb
    pd = _align_pow(xr, yr, alpha)
    align = jnp.sum(jnp.where(row_ids < b, pd, 0.0)) * jnp.where(i == j, 1.0, 0.0)

    # Per-step partials on a lane-dense (1,1,128) row: each grid step owns an
    # independent output block, so the pair axis can be "parallel" (v7x megacore).
    lane = jax.lax.broadcasted_iota(jnp.int32, (1, 1, 128), 2)
    out_ref[...] = jnp.where(lane == 0, sum_x,
                   jnp.where(lane == 1, sum_y,
                   jnp.where(lane == 2, align, 0.0))).astype(jnp.float32)


# ---------------------------------- wrapper --------------------------------------

def hypersphere_loss(z_a, z_b, t=1.0, lam=1.0, alpha=2.0, *,
                     bf16_gram=None, block_rows=256, tiled=None):
    """Pallas TPU implementation of HypersphereLoss.forward. Returns a scalar."""
    assert z_a.shape == z_b.shape and z_a.ndim == 2
    b, d = z_a.shape
    if b < 2:
        raise ValueError("HypersphereLoss needs batch >= 2 (pairwise uniformity term).")

    t, lam, alpha = float(t), float(lam), float(alpha)
    if bf16_gram is None:
        # Feed the MXU bf16 once the Gram is real work; with f32 accumulation the
        # loss loses only ~3 decimal digits (Gram entries are in [-1, 1]).
        bf16_gram = b >= 512

    cap = _vmem_capacity_bytes()
    itemsize = jnp.dtype(z_a.dtype).itemsize

    # Stacked (2b,2b) Gram only while it is free MXU fill (one native output tile);
    # past that it just doubles MXU work computing the useless x.yT / y.xT blocks.
    stacked = (2 * b) <= _mxu_dim() and (b % 8) == 0

    gram_elems = (2 * b) * (2 * b) * 3 if stacked else b * b * 6
    est = (2 * b * d * itemsize                    # resident native inputs
           + 2 * b * d * 4                         # f32 normalized copies
           + (2 * b * d * 2 if bf16_gram else 0)   # bf16 MXU feeds
           + (2 * b * d * 4 if stacked else 0)     # stacked staging scratch
           + gram_elems * 4)                       # gram(s) + exp temporaries

    if tiled is None:
        tiled = est > int(cap * 0.7)               # leave headroom vs physical VMEM

    if not tiled:
        compiler_params = None
        if est > (12 << 20):   # v5e scoped-VMEM default is only 16 MiB: raise explicitly,
            compiler_params = pltpu.CompilerParams(   # but never near physical capacity.
                vmem_limit_bytes=int(min(max(est * 3 // 2, 32 << 20), int(cap * 0.85))))
        kernel = functools.partial(
            _single_tile_kernel, t=t, lam=lam, alpha=alpha, b=b,
            stacked=stacked, bf16_gram=bf16_gram)
        out = pl.pallas_call(
            kernel,
            out_shape=jax.ShapeDtypeStruct((1, 1), jnp.float32),
            in_specs=[pl.BlockSpec(memory_space=pltpu.MemorySpace.VMEM),
                      pl.BlockSpec(memory_space=pltpu.MemorySpace.VMEM)],
            out_specs=pl.BlockSpec(memory_space=pltpu.MemorySpace.VMEM),
            scratch_shapes=([pltpu.VMEM((2 * b, d), jnp.float32)] if stacked else []),
            compiler_params=compiler_params,
        )(z_a, z_b)
        return out[0, 0]

    # ---- tiled path: upper-triangular block pairs of the Gram ----
    # TODO(synk): for very large d the (tb, d) blocks should additionally be tiled
    # over d with an in-kernel accumulation loop.
    tb = int(block_rows)
    b_pad = -(-b // tb) * tb
    if b_pad != b:
        # Zero-pad instead of relying on OOB-block reads; pad rows are masked out.
        z_a = jnp.pad(z_a, ((0, b_pad - b), (0, 0)))
        z_b = jnp.pad(z_b, ((0, b_pad - b), (0, 0)))
    nb = b_pad // tb
    # Row-major over j for fixed i: the row-block index repeats across consecutive
    # steps, so the pipeline skips re-fetching those blocks.
    pair_list = [(i, j) for i in range(nb) for j in range(i, nb)]
    num_pairs = len(pair_list)
    ii = jnp.asarray([p[0] for p in pair_list], dtype=jnp.int32)
    jj = jnp.asarray([p[1] for p in pair_list], dtype=jnp.int32)

    est_tiled = (8 * tb * d * itemsize     # 4 double-buffered input blocks
                 + 4 * tb * d * 4          # f32 normalized blocks
                 + 4 * tb * d * 2          # bf16 MXU feeds
                 + 6 * tb * tb * 4         # two Grams + exp/mask temporaries
                 + (1 << 20))
    compiler_params = pltpu.CompilerParams(
        dimension_semantics=("parallel",),  # independent pair blocks -> v7x megacore
        vmem_limit_bytes=int(min(max(est_tiled * 3 // 2, 32 << 20), int(cap * 0.85))))

    kernel = functools.partial(
        _pair_block_kernel, t=t, alpha=alpha, b=b, tb=tb, bf16_gram=bf16_gram)
    partials = pl.pallas_call(
        kernel,
        out_shape=jax.ShapeDtypeStruct((num_pairs, 1, 128), jnp.float32),
        grid_spec=pltpu.PrefetchScalarGridSpec(
            num_scalar_prefetch=2,
            grid=(num_pairs,),
            in_specs=[
                pl.BlockSpec((tb, d), lambda p, ii_r, jj_r: (ii_r[p], 0)),  # x row blk
                pl.BlockSpec((tb, d), lambda p, ii_r, jj_r: (jj_r[p], 0)),  # x col blk
                pl.BlockSpec((tb, d), lambda p, ii_r, jj_r: (ii_r[p], 0)),  # y row blk
                pl.BlockSpec((tb, d), lambda p, ii_r, jj_r: (jj_r[p], 0)),  # y col blk
            ],
            out_specs=pl.BlockSpec((1, 1, 128), lambda p, ii_r, jj_r: (p, 0, 0)),
        ),
        compiler_params=compiler_params,
    )(ii, jj, z_a, z_a, z_b, z_b)

    # Tiny scalar epilogue (a handful of XLA scalar ops).
    sum_x = jnp.sum(partials[:, 0, 0])        # = 2 * sum_{r<c} exp(2t*G^x_rc)
    sum_y = jnp.sum(partials[:, 0, 1])
    sum_align = jnp.sum(partials[:, 0, 2])
    n_pairs = b * (b - 1) / 2.0
    scale = math.exp(-2.0 * t) / (2.0 * n_pairs)   # folded exp(-2t) and 1/(2*n_pairs)
    lalign = sum_align / b
    lunif = (jnp.log(sum_x * scale) + jnp.log(sum_y * scale)) * 0.5
    return -(lalign + lam * lunif)


# --------------------------------- validation ------------------------------------

def _reference_loss(z_a, z_b, t=1.0, lam=1.0, alpha=2.0):
    """Pure-JAX reference mirroring the PyTorch module (for validation)."""
    def norm(v):
        n = jnp.linalg.norm(v, axis=1, keepdims=True)
        return v / jnp.maximum(n, 1e-12)

    x, y = norm(z_a), norm(z_b)
    lalign = jnp.mean(jnp.sum((x - y) ** 2, axis=1) ** (alpha / 2.0))

    def lunif(v):
        d2 = jnp.sum((v[:, None, :] - v[None, :, :]) ** 2, axis=-1)
        bsz = v.shape[0]
        mask = jnp.triu(jnp.ones((bsz, bsz), bool), k=1)
        vals = jnp.where(mask, jnp.exp(-t * d2), 0.0)
        return jnp.log(jnp.sum(vals) / (bsz * (bsz - 1) / 2.0))

    return -(lalign + lam * (lunif(x) + lunif(y)) / 2.0)


if __name__ == "__main__":
    key = jax.random.PRNGKey(0)
    ka, kb = jax.random.split(key)

    def check(b, d, tol, **kw):
        za = jax.random.normal(jax.random.fold_in(ka, b * 131 + d), (b, d), jnp.float32)
        zb = jax.random.normal(jax.random.fold_in(kb, b * 131 + d), (b, d), jnp.float32)
        got = jax.block_until_ready(
            hypersphere_loss(za, zb, t=1.0, lam=1.0, alpha=2.0, **kw))
        ref = _reference_loss(za, zb, t=1.0, lam=1.0, alpha=2.0)
        assert jnp.allclose(got, ref, rtol=tol, atol=tol), (b, d, float(got), float(ref))

    # Small single-tile stacked path (the module's typical tiny-b regime).
    check(8, 32, 1e-4)
    # Non-stacked single-tile path (2b exceeds one native MXU tile).
    check(160, 64, 1e-3, bf16_gram=False)
    # Tiled symmetric-pair path, f32 Gram, exercises padding masks (300 % 256 != 0).
    check(300, 64, 1e-3, tiled=True, bf16_gram=False)
    # Tiled path with bf16 MXU feeds (the large-b production configuration).
    check(300, 64, 5e-2, tiled=True, bf16_gram=True)

    print("KERNEL_OK")
</pallas_src>

<mosaic_0001>
module attributes {stable_mosaic.version = 11 : i64} {
  func.func @_single_tile_kernel(%arg0: memref<8x32xf32, #tpu.memory_space<vmem>>, %arg1: memref<8x32xf32, #tpu.memory_space<vmem>>, %arg2: memref<1x1xf32, #tpu.memory_space<vmem>>, %arg3: memref<16x32xf32, #tpu.memory_space<vmem>>) attributes {dimension_semantics = [], scalar_prefetch = 0 : i64, scratch_operands = 1 : i64, tpu.core_type = #tpu.core_type<tc>} {
    %c0 = arith.constant 0 : index
    %c0_0 = arith.constant 0 : index
    %0 = vector.load %arg0[%c0, %c0_0] : memref<8x32xf32, #tpu.memory_space<vmem>>, vector<8x32xf32>
    %1 = arith.mulf %0, %0 : vector<8x32xf32>
    %cst = arith.constant dense<0.000000e+00> : vector<8xf32>
    %2 = vector.multi_reduction <add>, %1, %cst [1] : vector<8x32xf32> to vector<8xf32>
    %3 = vector.shape_cast %2 : vector<8xf32> to vector<8x1xf32>
    %cst_1 = arith.constant 1.000000e-24 : f32
    %4 = vector.broadcast %cst_1 : f32 to vector<8x1xf32>
    %5 = arith.maximumf %3, %4 : vector<8x1xf32>
    %6 = math.rsqrt %5 : vector<8x1xf32>
    %7 = vector.broadcast %6 : vector<8x1xf32> to vector<8x32xf32>
    %8 = arith.mulf %0, %7 : vector<8x32xf32>
    %c0_2 = arith.constant 0 : index
    %c0_3 = arith.constant 0 : index
    %9 = vector.load %arg1[%c0_2, %c0_3] : memref<8x32xf32, #tpu.memory_space<vmem>>, vector<8x32xf32>
    %10 = arith.mulf %9, %9 : vector<8x32xf32>
    %cst_4 = arith.constant dense<0.000000e+00> : vector<8xf32>
    %11 = vector.multi_reduction <add>, %10, %cst_4 [1] : vector<8x32xf32> to vector<8xf32>
    %12 = vector.shape_cast %11 : vector<8xf32> to vector<8x1xf32>
    %cst_5 = arith.constant 1.000000e-24 : f32
    %13 = vector.broadcast %cst_5 : f32 to vector<8x1xf32>
    %14 = arith.maximumf %12, %13 : vector<8x1xf32>
    %15 = math.rsqrt %14 : vector<8x1xf32>
    %16 = vector.broadcast %15 : vector<8x1xf32> to vector<8x32xf32>
    %17 = arith.mulf %9, %16 : vector<8x32xf32>
    %18 = arith.mulf %8, %17 : vector<8x32xf32>
    %cst_6 = arith.constant dense<0.000000e+00> : vector<8xf32>
    %19 = vector.multi_reduction <add>, %18, %cst_6 [1] : vector<8x32xf32> to vector<8xf32>
    %20 = vector.shape_cast %19 : vector<8xf32> to vector<8x1xf32>
    %cst_7 = arith.constant 2.000000e+00 : f32
    %21 = vector.broadcast %cst_7 : f32 to vector<8x1xf32>
    %22 = arith.mulf %21, %20 : vector<8x1xf32>
    %cst_8 = arith.constant 2.000000e+00 : f32
    %23 = vector.broadcast %cst_8 : f32 to vector<8x1xf32>
    %24 = arith.subf %23, %22 : vector<8x1xf32>
    %cst_9 = arith.constant 0.000000e+00 : f32
    %25 = vector.broadcast %cst_9 : f32 to vector<8x1xf32>
    %26 = arith.maximumf %24, %25 : vector<8x1xf32>
    %27 = vector.shape_cast %26 : vector<8x1xf32> to vector<1x8x1xf32>
    %cst_10 = arith.constant dense<0.000000e+00> : vector<1xf32>
    %28 = vector.multi_reduction <add>, %27, %cst_10 [1, 2] : vector<1x8x1xf32> to vector<1xf32>
    %29 = vector.shape_cast %28 : vector<1xf32> to vector<1x1x1xf32>
    %30 = vector.extract %29[0, 0, 0] : f32 from vector<1x1x1xf32>
    %cst_11 = arith.constant 8.000000e+00 : f32
    %31 = arith.divf %30, %cst_11 : f32
    %c0_12 = arith.constant 0 : index
    %c0_13 = arith.constant 0 : index
    %32 = vector.load %arg3[%c0_12, %c0_13] : memref<16x32xf32, #tpu.memory_space<vmem>>, vector<8x32xf32>
    tpu.vector_store %arg3[%c0_12, %c0_13], %8 {strides = array<i32>} : memref<16x32xf32, #tpu.memory_space<vmem>>, vector<8x32xf32>,
    %c8 = arith.constant 8 : index
    %c0_14 = arith.constant 0 : index
    %33 = vector.load %arg3[%c8, %c0_14] : memref<16x32xf32, #tpu.memory_space<vmem>>, vector<8x32xf32>
    tpu.vector_store %arg3[%c8, %c0_14], %17 {strides = array<i32>} : memref<16x32xf32, #tpu.memory_space<vmem>>, vector<8x32xf32>,
    %c0_15 = arith.constant 0 : index
    %c0_16 = arith.constant 0 : index
    %34 = vector.load %arg3[%c0_15, %c0_16] : memref<16x32xf32, #tpu.memory_space<vmem>>, vector<16x32xf32>
    %cst_17 = arith.constant dense<0.000000e+00> : vector<16x16xf32>
    %35 = tpu.matmul %34, %34, %cst_17 {dimension_numbers = #tpu.dot_dimension_numbers<[1], [1], [0], [0], [0, 0, 1, 0], [], []>} : vector<16x32xf32>, vector<16x32xf32>, vector<16x16xf32> -> vector<16x16xf32>
    %36 = vector.extract_strided_slice %35 {offsets = [0, 0], sizes = [8, 8], strides = [1, 1]} : vector<16x16xf32> to vector<8x8xf32>
    %cst_18 = arith.constant 2.000000e+00 : f32
    %37 = vector.broadcast %cst_18 : f32 to vector<8x8xf32>
    %38 = arith.mulf %37, %36 : vector<8x8xf32>
    %39 = math.exp %38 : vector<8x8xf32>
    %40 = vector.shape_cast %39 : vector<8x8xf32> to vector<1x8x8xf32>
    %cst_19 = arith.constant dense<0.000000e+00> : vector<1xf32>
    %41 = vector.multi_reduction <add>, %40, %cst_19 [1, 2] : vector<1x8x8xf32> to vector<1xf32>
    %42 = vector.shape_cast %41 : vector<1xf32> to vector<1x1x1xf32>
    %43 = vector.extract %42[0, 0, 0] : f32 from vector<1x1x1xf32>
    %cst_20 = arith.constant 0.135335281 : f32
    %44 = arith.mulf %43, %cst_20 : f32
    %cst_21 = arith.constant 8.000000e+00 : f32
    %45 = arith.subf %44, %cst_21 : f32
    %cst_22 = arith.constant 5.600000e+01 : f32
    %46 = arith.divf %45, %cst_22 : f32
    %47 = vector.extract_strided_slice %35 {offsets = [8, 8], sizes = [8, 8], strides = [1, 1]} : vector<16x16xf32> to vector<8x8xf32>
    %cst_23 = arith.constant 2.000000e+00 : f32
    %48 = vector.broadcast %cst_23 : f32 to vector<8x8xf32>
    %49 = arith.mulf %48, %47 : vector<8x8xf32>
    %50 = math.exp %49 : vector<8x8xf32>
    %51 = vector.shape_cast %50 : vector<8x8xf32> to vector<1x8x8xf32>
    %cst_24 = arith.constant dense<0.000000e+00> : vector<1xf32>
    %52 = vector.multi_reduction <add>, %51, %cst_24 [1, 2] : vector<1x8x8xf32> to vector<1xf32>
    %53 = vector.shape_cast %52 : vector<1xf32> to vector<1x1x1xf32>
    %54 = vector.extract %53[0, 0, 0] : f32 from vector<1x1x1xf32>
    %cst_25 = arith.constant 0.135335281 : f32
    %55 = arith.mulf %54, %cst_25 : f32
    %cst_26 = arith.constant 8.000000e+00 : f32
    %56 = arith.subf %55, %cst_26 : f32
    %cst_27 = arith.constant 5.600000e+01 : f32
    %57 = arith.divf %56, %cst_27 : f32
    %58 = math.log %46 : f32
    %59 = math.log %57 : f32
    %60 = arith.addf %58, %59 : f32
    %cst_28 = arith.constant 5.000000e-01 : f32
    %61 = arith.mulf %60, %cst_28 : f32
    %cst_29 = arith.constant 1.000000e+00 : f32
    %62 = arith.mulf %cst_29, %61 : f32
    %63 = arith.addf %31, %62 : f32
    %cst_30 = arith.constant 0.000000e+00 : f32
    %64 = arith.subf %cst_30, %63 : f32
    %65 = vector.broadcast %64 : f32 to vector<1x1xf32>
    %c0_31 = arith.constant 0 : index
    %c0_32 = arith.constant 0 : index
    %66 = vector.load %arg2[%c0_31, %c0_32] : memref<1x1xf32, #tpu.memory_space<vmem>>, vector<1x1xf32>
    tpu.vector_store %arg2[%c0_31, %c0_32], %65 {strides = array<i32>} : memref<1x1xf32, #tpu.memory_space<vmem>>, vector<1x1xf32>,
    return
  }
}

</mosaic_0001>

<llo_original>
// kernel: tpu_custom_call.1
$region0: #{tpu_custom_call.1}
  #allocation0 [shape = 'u32[]', space=smem, size = 0x4, offset = 0x4, fixed_abs, tag = 'smem constant byte address 0x4 - core index']
  #allocation1 [shape = 'u32[144,128]{1,0:T(1,128)}', space=vmem, size = 0x12000, scoped, tag = 'internal scratch']
  #allocation2 [shape = 'f32[16,32]{1,0:T(8,128)}', space=vmem, size = 0x2000, scoped, tag = 'scratch operand']
  %s0 = inlined_call_operand.hbm [shape: f32[8,32], index: 0, kind: input, shape index: {}]
  %s1 = inlined_call_operand.hbm [shape: f32[8,32], index: 1, kind: input, shape index: {}]
  %s2 = inlined_call_operand.hbm [shape: f32[1,1], index: 2, kind: output, shape index: {}]
  %s3 = sld [smem:[#allocation0]]
  $region26: #{tpu_custom_call.1} parent=0
    _
  %s5 = ssub.s32 1, %s3
  %s6 = scalar_select 0, %s5, %s3
  $region1: #{tpu_custom_call.1} parent=0
    #allocation3 [shape = 'u8[4096]{0}', space=vmem, size = 0x1000, scoped, tag = 'input window, operand 0, single buffered']
    #allocation4 [shape = 's32[1]{0}', space=sflag, size = 0x4, scoped, tag = 'scoped memory for tpu_custom_call.1']
    #allocation5 [shape = 's32[1]{0}', space=sflag, size = 0x4, scoped, tag = 'scoped memory for tpu_custom_call.1']
    #allocation6 [shape = 'u8[4096]{0}', space=vmem, size = 0x1000, scoped, tag = 'input window, operand 1, single buffered']
    #allocation7 [shape = 's32[1]{0}', space=sflag, size = 0x4, scoped, tag = 'scoped memory for tpu_custom_call.1']
    #allocation8 [shape = 'u8[512]{0}', space=vmem, size = 0x400, scoped, tag = 'output window, operand 0, single buffered']
    %7 = vsyncpa [#allocation4], 0
    %8 = vsyncpa [#allocation7], 0
    %9 = vsyncpa [#allocation5], 0
    // Predicated region
    $region2: #{tpu_custom_call.1} parent=1 // pred_check
      _
    $region3: #{tpu_custom_call.1} parent=1 // pred_check_branch
      %11 = sbr.rel (0) target = $region5
    $region4: #{tpu_custom_call.1} parent=1 // pred_region
      %s13 = ssub.s32 128, 128
      %14 = vsyncadd [#allocation4], %s13
      %s16 = sshll.u32 [#allocation3], 4
      %s17 = int_to_ptr.vmem [resolvable:$true] %s16
      %19 = dma.hbm_to_vmem [thread:$0]  %s0, 128, %s17, [#allocation4]
    $region5: #{tpu_custom_call.1} parent=1 // pred_fallthru
      _
    // Predicated region
    $region6: #{tpu_custom_call.1} parent=1 // pred_check
      _
    $region7: #{tpu_custom_call.1} parent=1 // pred_check_branch
      %21 = sbr.rel (0) target = $region9
    $region8: #{tpu_custom_call.1} parent=1 // pred_region
      %s23 = ssub.s32 128, 128
      %24 = vsyncadd [#allocation7], %s23
      %s26 = sshll.u32 [#allocation6], 4
      %s27 = int_to_ptr.vmem [resolvable:$true] %s26
      %29 = dma.hbm_to_vmem [thread:$0]  %s1, 128, %s27, [#allocation7]
    $region9: #{tpu_custom_call.1} parent=1 // pred_fallthru
      _
    // Predicated region
    $region10: #{tpu_custom_call.1} parent=1 // pred_check
      _
    $region11: #{tpu_custom_call.1} parent=1 // pred_check_branch
      %31 = sbr.rel (0) target = $region13
    $region12: #{tpu_custom_call.1} parent=1 // pred_region
      %32 = dma.done [#allocation4], 128
    $region13: #{tpu_custom_call.1} parent=1 // pred_fallthru
      _
    // Predicated region
    $region14: #{tpu_custom_call.1} parent=1 // pred_check
      _
    $region15: #{tpu_custom_call.1} parent=1 // pred_check_branch
      %34 = sbr.rel (0) target = $region17
    $region16: #{tpu_custom_call.1} parent=1 // pred_region
      %35 = dma.done [#allocation7], 128
    $region17: #{tpu_custom_call.1} parent=1 // pred_fallthru
      _
    %v36 = vld [vmem:[#allocation3] sm:$0xff]
    %v37 = vmul.f32 %v36, %v36
    %vm38 = vcmask 261120
    %v39 = vsel %vm38, %v37, 0.0
    %40 = vadd.xlane.f32.xlu0 %v39
    %v41 = vpop.xlane.xlu0 %40
    %v42 = vmax.f32 %v41, 1e-24
    %v43 = vrsqrt.pop %v42
    %v44 = vmul.f32 %v36, %v43
    %v45 = vld [vmem:[#allocation6] sm:$0xff]
    %v46 = vmul.f32 %v45, %v45
    %v47 = vsel %vm38, %v46, 0.0
    %48 = vadd.xlane.f32.xlu0 %v47
    %v49 = vpop.xlane.xlu0 %48
    %v50 = vmax.f32 %v49, 1e-24
    %v51 = vrsqrt.pop %v50
    %v52 = vmul.f32 %v45, %v51
    %v53 = vmul.f32 %v44, %v52
    %v54 = vsel %vm38, %v53, 0.0
    %55 = vadd.xlane.f32.xlu0 %v54
    %v56 = vpop.xlane.xlu0 %55
    %v57 = vmul.f32 %v56, 2.0
    %v58 = vsub.f32 2.0, %v57
    %v59 = vmax.f32 %v58, 0.0
    %vm60 = vcmask 7168
    %v61 = vsel %vm60, %v59, 0.0
    %62 = vadd.xlane.f32.xlu0 %v61
    %v63 = vpop.xlane.xlu0 %62
    %v64 = vrot.slane %v63, 4
    %v65 = vadd.f32 %v63, %v64
    %v66 = vrot.slane %v65, 2
    %v67 = vadd.f32 %v65, %v66
    %v68 = vrot.slane %v67, 1
    %v69 = vadd.f32 %v67, %v68
    %s70 = vtos %v69
    %v71 = vrcp.pop 8.0
    %s72 = vtos %v71
    %s73 = smul.f32 %s70, %s72
    %74 = vst.msk [vmem:[#allocation2] sm:$0xff] %vm38, %v44
    %75 = vst.msk [vmem:[#allocation2 + $0x8] sm:$0xff] %vm38, %v52
    %v76 = vld [vmem:[#allocation2] sm:$0xff]
    %v77 = vld [vmem:[#allocation2 + $0x8] sm:$0xff]
    %v79 = vsel %vm38, %v76, 0
    %v82 = vsel %vm38, %v77, 0
    %84 = vmatprep.subr.mxu0 0.0
    %85 = vmatpush1.xpose.msra.mxu0 %v79
    %86 = vmatprep.subr.mxu0 0.0
    %87 = vmatpush1.xpose.msra.mxu0 %v82
    %88 = vmatprep.subr.mxu0 0.0
    %89 = vmatpush1.xpose.msra.mxu0 0.0
    %90 = vmatprep.subr.mxu0 0.0
    %91 = vmatpush1.xpose.msra.mxu0 0.0
    %92 = vmatprep.subr.mxu0 0.0
    %93 = vmatpush1.xpose.msra.mxu0 0.0
    %94 = vmatprep.subr.mxu0 0.0
    %95 = vmatpush1.xpose.msra.mxu0 0.0
    %96 = vmatprep.subr.mxu0 0.0
    %97 = vmatpush1.xpose.msra.mxu0 0.0
    %98 = vmatprep.subr.mxu0 0.0
    %99 = vmatpush1.xpose.msra.mxu0 0.0
    %100 = vmatprep.subr.mxu0 0.0
    %101 = vmatpush1.xpose.msra.mxu0 0.0
    %102 = vmatprep.subr.mxu0 0.0
    %103 = vmatpush1.xpose.msra.mxu0 0.0
    %104 = vmatprep.subr.mxu0 0.0
    %105 = vmatpush1.xpose.msra.mxu0 0.0
    %106 = vmatprep.subr.mxu0 0.0
    %107 = vmatpush1.xpose.msra.mxu0 0.0
    %108 = vmatprep.subr.mxu0 0.0
    %109 = vmatpush1.xpose.msra.mxu0 0.0
    %110 = vmatprep.subr.mxu0 0.0
    %111 = vmatpush1.xpose.msra.mxu0 0.0
    %112 = vmatprep.subr.mxu0 0.0
    %113 = vmatpush1.xpose.msra.mxu0 0.0
    %114 = vmatprep.subr.mxu0 0.0
    %115 = vmatpush1.xpose.msra.mxu0 0.0
    %116 = vmatprep.subr.mxu0 0.0
    %117 = vmatpush1.xpose.msra.mxu0 0.0
    %118 = vmatprep.subr.mxu0 0.0
    %119 = vmatpush1.xpose.msra.mxu0 0.0
    %120 = vmatprep.subr.mxu0 0.0
    %121 = vmatpush1.xpose.msra.mxu0 0.0
    %122 = vmatprep.subr.mxu0 0.0
    %123 = vmatpush1.xpose.msra.mxu0 0.0
    %124 = vmatprep.subr.mxu0 0.0
    %125 = vmatpush1.xpose.msra.mxu0 0.0
    %126 = vmatprep.subr.mxu0 0.0
    %127 = vmatpush1.xpose.msra.mxu0 0.0
    %128 = vmatprep.subr.mxu0 0.0
    %129 = vmatpush1.xpose.msra.mxu0 0.0
    %130 = vmatprep.subr.mxu0 0.0
    %131 = vmatpush1.xpose.msra.mxu0 0.0
    %132 = vmatprep.subr.mxu0 0.0
    %133 = vmatpush1.xpose.msra.mxu0 0.0
    %134 = vmatprep.subr.mxu0 0.0
    %135 = vmatpush1.xpose.msra.mxu0 0.0
    %136 = vmatprep.subr.mxu0 0.0
    %137 = vmatpush1.xpose.msra.mxu0 0.0
    %138 = vmatprep.subr.mxu0 0.0
    %139 = vmatpush1.xpose.msra.mxu0 0.0
    %140 = vmatprep.subr.mxu0 0.0
    %141 = vmatpush1.xpose.msra.mxu0 0.0
    %142 = vmatprep.subr.mxu0 0.0
    %143 = vmatpush1.xpose.msra.mxu0 0.0
    %144 = vmatprep.subr.mxu0 0.0
    %145 = vmatpush1.xpose.msra.mxu0 0.0
    %146 = vmatprep.subr.mxu0 0.0
    %147 = vmatpush1.xpose.msra.mxu0 0.0
    %148 = vmatprep.mubr.f32.mxu0 0.0
    %149 = vmatmul.mubr.f32.gmra.mrb[0].mxu0 %v79
    %v150 = vpop.f32.mrb[0].mxu0
    %v151 = vadd.f32 0.0, %v150
    %v152 = vpop.f32.mrb[0].mxu0
    %153 = vmatprep.mubr.f32.mxu0 0.0
    %154 = vmatmul.mubr.f32.gmra.mrb[0].mxu0 %v82
    %v155 = vpop.f32.mrb[0].mxu0
    %v156 = vadd.f32 0.0, %v155
    %v157 = vpop.f32.mrb[0].mxu0
    %158 = vdwg.mxu0
    %v159 = vmul.f32 %v151, 2.0
    %v160 = vmul.f32 %v159, 1.442695
    %v161 = vpow.pop %v160
    %vm162 = vcmask 64512
    %v163 = vsel %vm162, %v161, 0.0
    %164 = vadd.xlane.f32.xlu0 %v163
    %v165 = vpop.xlane.xlu0 %164
    %v166 = vrot.slane %v165, 4
    %v167 = vadd.f32 %v165, %v166
    %v168 = vrot.slane %v167, 2
    %v169 = vadd.f32 %v167, %v168
    %v170 = vrot.slane %v169, 1
    %v171 = vadd.f32 %v169, %v170
    %s172 = vtos %v171
    %s173 = smul.f32 %s172, 0.13533528
    %s174 = ssub.f32 %s173, 8.0
    %v175 = vrcp.pop 56.0
    %s176 = vtos %v175
    %s177 = smul.f32 %s174, %s176
    %v178 = vmul.f32 %v156, 2.0
    %v179 = vmul.f32 %v178, 1.442695
    %v180 = vpow.pop %v179
    %182 = vrot.lane.b32.xlu0 %v180, 120
    %v183 = vpop.permute.xlu0 %182
    %v185 = vsel %vm162, %v183, 0.0
    %186 = vadd.xlane.f32.xlu0 %v185
    %v187 = vpop.xlane.xlu0 %186
    %v188 = vrot.slane %v187, 4
    %v189 = vadd.f32 %v187, %v188
    %v190 = vrot.slane %v189, 2
    %v191 = vadd.f32 %v189, %v190
    %v192 = vrot.slane %v191, 1
    %v193 = vadd.f32 %v191, %v192
    %s194 = vtos %v193
    %s195 = smul.f32 %s194, 0.13533528
    %s196 = ssub.f32 %s195, 8.0
    %v197 = vrcp.pop 56.0
    %s198 = vtos %v197
    %s199 = smul.f32 %s196, %s198
    %v200 = vstv %s177
    %v201 = vlog2.pop %v200
    %v202 = vmul.f32 %v201, 0.6931472
    %s203 = vtos %v202
    %v204 = vstv %s199
    %v205 = vlog2.pop %v204
    %v206 = vmul.f32 %v205, 0.6931472
    %s207 = vtos %v206
    %s208 = sadd.f32 %s203, %s207
    %s209 = smul.f32 %s208, 0.5
    %s210 = sadd.f32 %s73, %s209
    %s211 = ssub.f32 0.0, %s210
    %v212 = vstv %s211
    %vm213 = vcmask 0
    %214 = vst.msk [vmem:[#allocation8] sm:$0x1] %vm213, %v212
    // Predicated region
    $region18: #{tpu_custom_call.1} parent=1 // pred_check
      _
    $region19: #{tpu_custom_call.1} parent=1 // pred_check_branch
      %216 = sbr.rel (0) target = $region21
    $region20: #{tpu_custom_call.1} parent=1 // pred_region
      %s218 = ssub.s32 16, 16
      %219 = vsyncadd [#allocation5], %s218
      %s221 = sshll.u32 [#allocation8], 4
      %s222 = int_to_ptr.vmem [resolvable:$true] %s221
      %224 = dma.vmem_to_hbm [thread:$0]  %s222, 16, %s2, [#allocation5]
    $region21: #{tpu_custom_call.1} parent=1 // pred_fallthru
      _
    // Predicated region
    $region22: #{tpu_custom_call.1} parent=1 // pred_check
      _
    $region23: #{tpu_custom_call.1} parent=1 // pred_check_branch
      %226 = sbr.rel (0) target = $region25
    $region24: #{tpu_custom_call.1} parent=1 // pred_region
      %227 = dma.done [#allocation5], 16
    $region25: #{tpu_custom_call.1} parent=1 // pred_fallthru
      _
    %228 = vsyncpa [#allocation4], 1
    %229 = vsyncpa [#allocation7], 1
    %230 = vsyncpa [#allocation5], 1

</llo_original>
